<compile_context>
chip_gen: v7x
topology: tpu7x:2x2x1
jax: 0.10.0
libtpu: 0.0.40
codegen_flags: <defaults>
</compile_context>

<pallas_src>
import jax
import jax.numpy as jnp
from jax.experimental import pallas as pl
from jax.experimental.pallas import tpu as pltpu

# Original module dims
IN_FEATS = 90     # Linear 1 in_features
HID = 180         # Linear 1 out / Linear 2 in
N_NODES = 197     # Linear 2 out == number of graph nodes fed to GCNConv(1,1)

# Lane-padded dims (multiples of 128)
IN_P = 128
HID_P = 256
N_P = 256
SUBLANE = 8
TILE_B_MAX = 512  # per-step batch tile; keeps double-buffered tiles tiny on all gens

# Row offsets inside the packed bf16 weight slab (all multiples of 8 => aligned slices)
W1_OFF = 0
W2_OFF = IN_P
ADJ_OFF = IN_P + HID_P
SLAB_ROWS = IN_P + HID_P + N_P  # 640


def decoder_kernel(x_ref, w_ref, b_ref, out_ref):
    # x_ref: (TILE_B, IN_P)   bf16 activations (zero padded)
    # w_ref: (640, 256)       bf16 = [w1 (128x256); w2 (256x256); adjT (256x256)]
    # b_ref: (3, 256)         f32  = [b1; b2; gcn_b broadcast]
    # out_ref: (TILE_B, N_P)  f32
    w1 = w_ref[W1_OFF:W1_OFF + IN_P, :]
    w2 = w_ref[W2_OFF:W2_OFF + HID_P, :]
    adjT = w_ref[ADJ_OFF:ADJ_OFF + N_P, :]
    b1 = b_ref[0:1, :]
    b2 = b_ref[1:2, :]
    gcn_b = b_ref[2:3, :]

    # --- Linear(90 -> 180) + Tanh (Dropout p=0.2 is identity in eval) ---
    h = jnp.tanh(jnp.dot(x_ref[...], w1, preferred_element_type=jnp.float32) + b1)

    # --- Linear(180 -> 197) + Tanh (Dropout identity in eval) ---
    h = jnp.tanh(jnp.dot(h.astype(jnp.bfloat16), w2,
                         preferred_element_type=jnp.float32) + b2)

    # --- GCNConv(1,1): out[b, i] = sum_j A_norm[i, j] * h[b, j] * w_gcn + b_gcn ---
    # w_gcn is pre-folded into adjT on the host.
    out_ref[...] = jnp.dot(h.astype(jnp.bfloat16), adjT,
                           preferred_element_type=jnp.float32) + gcn_b


def build_params(key):
    k = jax.random.split(key, 6)
    # Linear(90, 180): torch stores (out, in); we keep the transposed (in, out) layout.
    lim1 = 1.0 / jnp.sqrt(jnp.float32(IN_FEATS))
    w1t = jax.random.uniform(k[0], (IN_FEATS, HID), jnp.float32, -lim1, lim1)
    b1 = jax.random.uniform(k[1], (HID,), jnp.float32, -lim1, lim1)
    # Linear(180, 197)
    lim2 = 1.0 / jnp.sqrt(jnp.float32(HID))
    w2t = jax.random.uniform(k[2], (HID, N_NODES), jnp.float32, -lim2, lim2)
    b2 = jax.random.uniform(k[3], (N_NODES,), jnp.float32, -lim2, lim2)
    # GCNConv(1, 1): scalar weight + scalar bias
    gcn_w = jax.random.uniform(k[4], (), jnp.float32, -1.0, 1.0)
    gcn_b = jax.random.uniform(k[5], (), jnp.float32, -1.0, 1.0)
    return dict(w1t=w1t, b1=b1, w2t=w2t, b2=b2, gcn_w=gcn_w, gcn_b=gcn_b)


def build_edge_index(n):
    # Deterministic synthetic graph: undirected ring over n nodes.
    i = jnp.arange(n, dtype=jnp.int32)
    j = (i + 1) % n
    src = jnp.concatenate([i, j])
    dst = jnp.concatenate([j, i])
    return jnp.stack([src, dst], axis=0)  # (2, 2n)


def build_norm_adj(edge_index, n):
    # PyG GCNConv normalization: A_hat = A + I, A_norm = D^-1/2 A_hat D^-1/2
    # TODO(synk): assumes edge_index carries no duplicate edges or pre-existing
    # self-loops (true for the synthetic ring); PyG scatter-adds duplicates.
    src, dst = edge_index[0], edge_index[1]
    A = jnp.zeros((n, n), jnp.float32).at[dst, src].set(1.0)
    A_hat = A + jnp.eye(n, dtype=jnp.float32)
    deg = A_hat.sum(axis=1)
    dinv = 1.0 / jnp.sqrt(deg)
    return dinv[:, None] * A_hat * dinv[None, :]


def prepare_constants(params, edge_index):
    """Host-side folding, zero-padding, bf16 cast, and packing into 2 arrays (3 DMAs total)."""
    A_norm = build_norm_adj(edge_index, N_NODES)
    adjT = (params["gcn_w"] * A_norm).T  # fold GCN scalar weight; kernel does h @ A_norm^T

    slab = jnp.zeros((SLAB_ROWS, 256), jnp.float32)
    slab = slab.at[W1_OFF:W1_OFF + IN_FEATS, :HID].set(params["w1t"])
    slab = slab.at[W2_OFF:W2_OFF + HID, :N_NODES].set(params["w2t"])
    slab = slab.at[ADJ_OFF:ADJ_OFF + N_NODES, :N_NODES].set(adjT)

    biases = jnp.zeros((3, 256), jnp.float32)
    biases = biases.at[0, :HID].set(params["b1"])
    biases = biases.at[1, :N_NODES].set(params["b2"])
    biases = biases.at[2, :].set(params["gcn_b"])

    return dict(w_slab=slab.astype(jnp.bfloat16), biases=biases)


def _batch_tiling(b):
    b_p = ((b + SUBLANE - 1) // SUBLANE) * SUBLANE
    tile = min(b_p, TILE_B_MAX)
    b_p = ((b_p + tile - 1) // tile) * tile
    return b_p, tile


def decoder_forward(x, consts):
    # x: (B, 1, 90) f32 -> {'x_input': (B,1,90), 'x_output': (B,1,197)}
    B = x.shape[0]
    B_P, tile_b = _batch_tiling(B)

    # Host-side pad + bf16 cast of activations (lane-dense, unmasked DMAs).
    xp = jnp.zeros((B_P, IN_P), jnp.bfloat16).at[:B, :IN_FEATS].set(
        x[:, 0, :].astype(jnp.bfloat16))

    flops = 2 * B_P * (IN_P * HID_P + HID_P * N_P + N_P * N_P)
    transcendentals = B_P * (HID_P + N_P)
    bytes_accessed = (2 * SLAB_ROWS * 256        # bf16 constant slab (fetched once)
                      + 4 * 3 * 256              # f32 biases
                      + 2 * B_P * IN_P           # bf16 x in
                      + 4 * B_P * N_P)           # f32 out

    out = pl.pallas_call(
        decoder_kernel,
        out_shape=jax.ShapeDtypeStruct((B_P, N_P), jnp.float32),
        grid=(B_P // tile_b,),
        in_specs=[
            pl.BlockSpec((tile_b, IN_P), lambda i: (i, 0)),          # x tile
            pl.BlockSpec((SLAB_ROWS, 256), lambda i: (0, 0)),        # weights: VMEM-resident
            pl.BlockSpec((3, 256), lambda i: (0, 0)),                # biases: VMEM-resident
        ],
        out_specs=pl.BlockSpec((tile_b, N_P), lambda i: (i, 0)),
        compiler_params=pltpu.CompilerParams(
            dimension_semantics=("parallel",)),
        cost_estimate=pl.CostEstimate(flops=flops,
                                      transcendentals=transcendentals,
                                      bytes_accessed=bytes_accessed),
    )(xp, consts["w_slab"], consts["biases"])

    return {"x_input": x, "x_output": out[:B, None, :N_NODES]}


def decoder_reference(x, params, edge_index):
    # Pure-JAX f32 reference (eval mode) for a loose correctness check.
    A_norm = build_norm_adj(edge_index, N_NODES)
    h = x[:, 0, :]
    h = jnp.tanh(h @ params["w1t"] + params["b1"])
    h = jnp.tanh(h @ params["w2t"] + params["b2"])
    h = (h * params["gcn_w"]) @ A_norm.T + params["gcn_b"]
    return h[:, None, :]


if __name__ == "__main__":
    key = jax.random.PRNGKey(0)
    k_x, k_p = jax.random.split(key)

    B = 4
    x = jax.random.normal(k_x, (B, 1, IN_FEATS), jnp.float32)

    params = build_params(k_p)
    edge_index = build_edge_index(N_NODES)
    consts = prepare_constants(params, edge_index)

    result = decoder_forward(x, consts)
    jax.block_until_ready(result["x_output"])

    assert result["x_input"].shape == (B, 1, IN_FEATS)
    assert result["x_output"].shape == (B, 1, N_NODES)

    # Loose tolerance: bf16 MXU inputs (incl. bf16 x) with f32 accumulation vs f32 reference.
    ref = decoder_reference(x, params, edge_index)
    max_diff = float(jnp.max(jnp.abs(result["x_output"] - ref)))
    assert max_diff < 5e-2, f"mismatch vs reference: {max_diff}"

    print("KERNEL_OK")
</pallas_src>

<mosaic_0001>
module attributes {stable_mosaic.version = 11 : i64} {
  func.func @decoder_kernel(%arg0: i32, %arg1: memref<8x128xbf16, #tpu.memory_space<vmem>>, %arg2: memref<640x256xbf16, #tpu.memory_space<vmem>>, %arg3: memref<3x256xf32, #tpu.memory_space<vmem>>, %arg4: memref<8x256xf32, #tpu.memory_space<vmem>>) attributes {dimension_semantics = [#tpu.dimension_semantics<parallel>], iteration_bounds = array<i64: 1>, scalar_prefetch = 0 : i64, scratch_operands = 0 : i64, tpu.core_type = #tpu.core_type<tc>, window_params = [{transform_indices = @transform_0, window_bounds = array<i64: 8, 128>}, {pipeline_mode = #tpu.pipeline_mode<synchronous>, transform_indices = @transform_1, window_bounds = array<i64: 640, 256>}, {pipeline_mode = #tpu.pipeline_mode<synchronous>, transform_indices = @transform_2, window_bounds = array<i64: 3, 256>}, {transform_indices = @transform_3, window_bounds = array<i64: 8, 256>}]} {
    %c0 = arith.constant 0 : index
    %c0_0 = arith.constant 0 : index
    %0 = vector.load %arg2[%c0, %c0_0] : memref<640x256xbf16, #tpu.memory_space<vmem>>, vector<128x256xbf16>
    %c128 = arith.constant 128 : index
    %c0_1 = arith.constant 0 : index
    %1 = vector.load %arg2[%c128, %c0_1] : memref<640x256xbf16, #tpu.memory_space<vmem>>, vector<256x256xbf16>
    %c384 = arith.constant 384 : index
    %c0_2 = arith.constant 0 : index
    %2 = vector.load %arg2[%c384, %c0_2] : memref<640x256xbf16, #tpu.memory_space<vmem>>, vector<256x256xbf16>
    %c0_3 = arith.constant 0 : index
    %c0_4 = arith.constant 0 : index
    %3 = vector.load %arg3[%c0_3, %c0_4] : memref<3x256xf32, #tpu.memory_space<vmem>>, vector<1x256xf32>
    %c1 = arith.constant 1 : index
    %c0_5 = arith.constant 0 : index
    %4 = vector.load %arg3[%c1, %c0_5] : memref<3x256xf32, #tpu.memory_space<vmem>>, vector<1x256xf32>
    %c2 = arith.constant 2 : index
    %c0_6 = arith.constant 0 : index
    %5 = vector.load %arg3[%c2, %c0_6] : memref<3x256xf32, #tpu.memory_space<vmem>>, vector<1x256xf32>
    %c0_7 = arith.constant 0 : index
    %c0_8 = arith.constant 0 : index
    %6 = vector.load %arg1[%c0_7, %c0_8] : memref<8x128xbf16, #tpu.memory_space<vmem>>, vector<8x128xbf16>
    %cst = arith.constant dense<0.000000e+00> : vector<8x256xf32>
    %7 = tpu.matmul %6, %0, %cst {dimension_numbers = #tpu.dot_dimension_numbers<[1], [0], [0], [1], [0, 0, 1, 1], [], []>} : vector<8x128xbf16>, vector<128x256xbf16>, vector<8x256xf32> -> vector<8x256xf32>
    %8 = vector.broadcast %3 : vector<1x256xf32> to vector<8x256xf32>
    %9 = arith.addf %7, %8 : vector<8x256xf32>
    %10 = math.tanh %9 : vector<8x256xf32>
    %11 = arith.truncf %10 : vector<8x256xf32> to vector<8x256xbf16>
    %cst_9 = arith.constant dense<0.000000e+00> : vector<8x256xf32>
    %12 = tpu.matmul %11, %1, %cst_9 {dimension_numbers = #tpu.dot_dimension_numbers<[1], [0], [0], [1], [0, 0, 1, 1], [], []>} : vector<8x256xbf16>, vector<256x256xbf16>, vector<8x256xf32> -> vector<8x256xf32>
    %13 = vector.broadcast %4 : vector<1x256xf32> to vector<8x256xf32>
    %14 = arith.addf %12, %13 : vector<8x256xf32>
    %15 = math.tanh %14 : vector<8x256xf32>
    %16 = arith.truncf %15 : vector<8x256xf32> to vector<8x256xbf16>
    %cst_10 = arith.constant dense<0.000000e+00> : vector<8x256xf32>
    %17 = tpu.matmul %16, %2, %cst_10 {dimension_numbers = #tpu.dot_dimension_numbers<[1], [0], [0], [1], [0, 0, 1, 1], [], []>} : vector<8x256xbf16>, vector<256x256xbf16>, vector<8x256xf32> -> vector<8x256xf32>
    %18 = vector.broadcast %5 : vector<1x256xf32> to vector<8x256xf32>
    %19 = arith.addf %17, %18 : vector<8x256xf32>
    %c0_11 = arith.constant 0 : index
    %c0_12 = arith.constant 0 : index
    %20 = vector.load %arg4[%c0_11, %c0_12] : memref<8x256xf32, #tpu.memory_space<vmem>>, vector<8x256xf32>
    tpu.vector_store %arg4[%c0_11, %c0_12], %19 {strides = array<i32>} : memref<8x256xf32, #tpu.memory_space<vmem>>, vector<8x256xf32>,
    return
  }
  func.func @transform_0(%arg0: i32) -> (i32, i32) {
    %c0_i32 = arith.constant 0 : i32
    %c0_i32_0 = arith.constant 0 : i32
    return %arg0, %c0_i32 : i32, i32
  }
  func.func @transform_1(%arg0: i32) -> (i32, i32) {
    %c0_i32 = arith.constant 0 : i32
    %c0_i32_0 = arith.constant 0 : i32
    %c0_i32_1 = arith.constant 0 : i32
    return %c0_i32, %c0_i32_0 : i32, i32
  }
  func.func @transform_2(%arg0: i32) -> (i32, i32) {
    %c0_i32 = arith.constant 0 : i32
    %c0_i32_0 = arith.constant 0 : i32
    %c0_i32_1 = arith.constant 0 : i32
    return %c0_i32, %c0_i32_0 : i32, i32
  }
  func.func @transform_3(%arg0: i32) -> (i32, i32) {
    %c0_i32 = arith.constant 0 : i32
    %c0_i32_0 = arith.constant 0 : i32
    return %arg0, %c0_i32 : i32, i32
  }
}

</mosaic_0001>

<llo_original>
// kernel: tpu_custom_call.1
$region0: #{tpu_custom_call.1}
  #allocation0 [shape = 'u32[]', space=smem, size = 0x4, offset = 0x4, fixed_abs, tag = 'smem constant byte address 0x4 - core index']
  #allocation1 [shape = 'u32[144,128]{1,0:T(1,128)}', space=vmem, size = 0x12000, scoped, tag = 'internal scratch']
  %s0 = inlined_call_operand.hbm [shape: bf16[8,128], index: 0, kind: input, shape index: {}]
  %s1 = inlined_call_operand.hbm [shape: bf16[640,256], index: 1, kind: input, shape index: {}]
  %s2 = inlined_call_operand.hbm [shape: f32[3,256], index: 2, kind: input, shape index: {}]
  %s3 = inlined_call_operand.hbm [shape: f32[8,256], index: 3, kind: output, shape index: {}]
  %s4 = sld [smem:[#allocation0]]
  $region34: #{tpu_custom_call.1} parent=0
    _
  %s6 = ssub.s32 1, %s4
  %s7 = scalar_select 0, %s6, %s4
  $region1: #{tpu_custom_call.1} parent=0
    #allocation2 [shape = 'u8[2048]{0}', space=vmem, size = 0x800, scoped, tag = 'input window, operand 0, single buffered']
    #allocation3 [shape = 's32[1]{0}', space=sflag, size = 0x4, scoped, tag = 'scoped memory for tpu_custom_call.1']
    #allocation4 [shape = 's32[1]{0}', space=sflag, size = 0x4, scoped, tag = 'scoped memory for tpu_custom_call.1']
    #allocation5 [shape = 'u8[327680]{0}', space=vmem, size = 0x50000, scoped, tag = 'input window, operand 1, single buffered']
    #allocation6 [shape = 's32[1]{0}', space=sflag, size = 0x4, scoped, tag = 'scoped memory for tpu_custom_call.1']
    #allocation7 [shape = 'u8[4096]{0}', space=vmem, size = 0x1000, scoped, tag = 'input window, operand 2, single buffered']
    #allocation8 [shape = 'u8[8192]{0}', space=vmem, size = 0x2000, scoped, tag = 'output window, operand 0, single buffered']
    %8 = vsyncpa [#allocation3], 0
    %9 = vsyncpa [#allocation6], 0
    %10 = vsyncpa [#allocation4], 0
    // Predicated region
    $region2: #{tpu_custom_call.1} parent=1 // pred_check
      _
    $region3: #{tpu_custom_call.1} parent=1 // pred_check_branch
      %12 = sbr.rel (0) target = $region5
    $region4: #{tpu_custom_call.1} parent=1 // pred_region
      %s14 = ssub.s32 64, 64
      %15 = vsyncadd [#allocation3], %s14
      %s17 = sshll.u32 [#allocation2], 4
      %s18 = int_to_ptr.vmem [resolvable:$true] %s17
      %20 = dma.hbm_to_vmem [thread:$0]  %s0, 64, %s18, [#allocation3]
    $region5: #{tpu_custom_call.1} parent=1 // pred_fallthru
      _
    // Predicated region
    $region6: #{tpu_custom_call.1} parent=1 // pred_check
      _
    $region7: #{tpu_custom_call.1} parent=1 // pred_check_branch
      %22 = sbr.rel (0) target = $region9
    $region8: #{tpu_custom_call.1} parent=1 // pred_region
      %s24 = ssub.s32 10240, 10240
      %25 = vsyncadd [#allocation6], %s24
      %s26 = sshll.u32 [#allocation5], 4
      %s27 = int_to_ptr.vmem [resolvable:$true] %s26
      %32 = dma.hbm_to_vmem [thread:$0]  %s1, 10240, %s27, [#allocation6], 128, 128, 8
    $region9: #{tpu_custom_call.1} parent=1 // pred_fallthru
      _
    // Predicated region
    $region10: #{tpu_custom_call.1} parent=1 // pred_check
      _
    $region11: #{tpu_custom_call.1} parent=1 // pred_check_branch
      %34 = sbr.rel (0) target = $region13
    $region12: #{tpu_custom_call.1} parent=1 // pred_region
      %s36 = ssub.s32 128, 128
      %37 = vsyncadd [#allocation6], %s36
      %s39 = sshll.u32 [#allocation7], 4
      %s40 = int_to_ptr.vmem [resolvable:$true] %s39
      %42 = dma.hbm_to_vmem [thread:$0]  %s2, 128, %s40, [#allocation6]
    $region13: #{tpu_custom_call.1} parent=1 // pred_fallthru
      _
    // Predicated region
    $region14: #{tpu_custom_call.1} parent=1 // pred_check
      _
    $region15: #{tpu_custom_call.1} parent=1 // pred_check_branch
      %44 = sbr.rel (0) target = $region17
    $region16: #{tpu_custom_call.1} parent=1 // pred_region
      %45 = dma.done [#allocation3], 64
    $region17: #{tpu_custom_call.1} parent=1 // pred_fallthru
      _
    // Predicated region
    $region18: #{tpu_custom_call.1} parent=1 // pred_check
      _
    $region19: #{tpu_custom_call.1} parent=1 // pred_check_branch
      %47 = sbr.rel (0) target = $region21
    $region20: #{tpu_custom_call.1} parent=1 // pred_region
      %48 = dma.done [#allocation6], 10240
    $region21: #{tpu_custom_call.1} parent=1 // pred_fallthru
      _
    // Predicated region
    $region22: #{tpu_custom_call.1} parent=1 // pred_check
      _
    $region23: #{tpu_custom_call.1} parent=1 // pred_check_branch
      %50 = sbr.rel (0) target = $region25
    $region24: #{tpu_custom_call.1} parent=1 // pred_region
      %51 = dma.done [#allocation6], 128
    $region25: #{tpu_custom_call.1} parent=1 // pred_fallthru
      _
    %v53 = vld [vmem:[#allocation5] sm:$0xff]
    %v54 = vld [vmem:[#allocation5 + $0x8] sm:$0xff]
    %v55 = vld [vmem:[#allocation5 + $0x10] sm:$0xff]
    %v56 = vld [vmem:[#allocation5 + $0x18] sm:$0xff]
    %v57 = vld [vmem:[#allocation5 + $0x20] sm:$0xff]
    %v58 = vld [vmem:[#allocation5 + $0x28] sm:$0xff]
    %v59 = vld [vmem:[#allocation5 + $0x30] sm:$0xff]
    %v60 = vld [vmem:[#allocation5 + $0x38] sm:$0xff]
    %v61 = vld [vmem:[#allocation5 + $0x40] sm:$0xff]
    %v62 = vld [vmem:[#allocation5 + $0x48] sm:$0xff]
    %v63 = vld [vmem:[#allocation5 + $0x50] sm:$0xff]
    %v64 = vld [vmem:[#allocation5 + $0x58] sm:$0xff]
    %v65 = vld [vmem:[#allocation5 + $0x60] sm:$0xff]
    %v66 = vld [vmem:[#allocation5 + $0x68] sm:$0xff]
    %v67 = vld [vmem:[#allocation5 + $0x70] sm:$0xff]
    %v68 = vld [vmem:[#allocation5 + $0x78] sm:$0xff]
    %v69 = vld [vmem:[#allocation5 + $0x80] sm:$0xff]
    %v70 = vld [vmem:[#allocation5 + $0x88] sm:$0xff]
    %v71 = vld [vmem:[#allocation5 + $0x90] sm:$0xff]
    %v72 = vld [vmem:[#allocation5 + $0x98] sm:$0xff]
    %v73 = vld [vmem:[#allocation5 + $0xa0] sm:$0xff]
    %v74 = vld [vmem:[#allocation5 + $0xa8] sm:$0xff]
    %v75 = vld [vmem:[#allocation5 + $0xb0] sm:$0xff]
    %v76 = vld [vmem:[#allocation5 + $0xb8] sm:$0xff]
    %v77 = vld [vmem:[#allocation5 + $0xc0] sm:$0xff]
    %v78 = vld [vmem:[#allocation5 + $0xc8] sm:$0xff]
    %v79 = vld [vmem:[#allocation5 + $0xd0] sm:$0xff]
    %v80 = vld [vmem:[#allocation5 + $0xd8] sm:$0xff]
    %v81 = vld [vmem:[#allocation5 + $0xe0] sm:$0xff]
    %v82 = vld [vmem:[#allocation5 + $0xe8] sm:$0xff]
    %v83 = vld [vmem:[#allocation5 + $0xf0] sm:$0xff]
    %v84 = vld [vmem:[#allocation5 + $0xf8] sm:$0xff]
    %v85 = vld [vmem:[#allocation5 + $0x100] sm:$0xff]
    %v86 = vld [vmem:[#allocation5 + $0x108] sm:$0xff]
    %v87 = vld [vmem:[#allocation5 + $0x110] sm:$0xff]
    %v88 = vld [vmem:[#allocation5 + $0x118] sm:$0xff]
    %v89 = vld [vmem:[#allocation5 + $0x120] sm:$0xff]
    %v90 = vld [vmem:[#allocation5 + $0x128] sm:$0xff]
    %v91 = vld [vmem:[#allocation5 + $0x130] sm:$0xff]
    %v92 = vld [vmem:[#allocation5 + $0x138] sm:$0xff]
    %v93 = vld [vmem:[#allocation5 + $0x140] sm:$0xff]
    %v94 = vld [vmem:[#allocation5 + $0x148] sm:$0xff]
    %v95 = vld [vmem:[#allocation5 + $0x150] sm:$0xff]
    %v96 = vld [vmem:[#allocation5 + $0x158] sm:$0xff]
    %v97 = vld [vmem:[#allocation5 + $0x160] sm:$0xff]
    %v98 = vld [vmem:[#allocation5 + $0x168] sm:$0xff]
    %v99 = vld [vmem:[#allocation5 + $0x170] sm:$0xff]
    %v100 = vld [vmem:[#allocation5 + $0x178] sm:$0xff]
    %v101 = vld [vmem:[#allocation5 + $0x180] sm:$0xff]
    %v102 = vld [vmem:[#allocation5 + $0x188] sm:$0xff]
    %v103 = vld [vmem:[#allocation5 + $0x190] sm:$0xff]
    %v104 = vld [vmem:[#allocation5 + $0x198] sm:$0xff]
    %v105 = vld [vmem:[#allocation5 + $0x1a0] sm:$0xff]
    %v106 = vld [vmem:[#allocation5 + $0x1a8] sm:$0xff]
    %v107 = vld [vmem:[#allocation5 + $0x1b0] sm:$0xff]
    %v108 = vld [vmem:[#allocation5 + $0x1b8] sm:$0xff]
    %v109 = vld [vmem:[#allocation5 + $0x1c0] sm:$0xff]
    %v110 = vld [vmem:[#allocation5 + $0x1c8] sm:$0xff]
    %v111 = vld [vmem:[#allocation5 + $0x1d0] sm:$0xff]
    %v112 = vld [vmem:[#allocation5 + $0x1d8] sm:$0xff]
    %v113 = vld [vmem:[#allocation5 + $0x1e0] sm:$0xff]
    %v114 = vld [vmem:[#allocation5 + $0x1e8] sm:$0xff]
    %v115 = vld [vmem:[#allocation5 + $0x1f0] sm:$0xff]
    %v116 = vld [vmem:[#allocation5 + $0x1f8] sm:$0xff]
    %v117 = vld [vmem:[#allocation5 + $0x200] sm:$0xff]
    %v118 = vld [vmem:[#allocation5 + $0x208] sm:$0xff]
    %v119 = vld [vmem:[#allocation5 + $0x210] sm:$0xff]
    %v120 = vld [vmem:[#allocation5 + $0x218] sm:$0xff]
    %v121 = vld [vmem:[#allocation5 + $0x220] sm:$0xff]
    %v122 = vld [vmem:[#allocation5 + $0x228] sm:$0xff]
    %v123 = vld [vmem:[#allocation5 + $0x230] sm:$0xff]
    %v124 = vld [vmem:[#allocation5 + $0x238] sm:$0xff]
    %v125 = vld [vmem:[#allocation5 + $0x240] sm:$0xff]
    %v126 = vld [vmem:[#allocation5 + $0x248] sm:$0xff]
    %v127 = vld [vmem:[#allocation5 + $0x250] sm:$0xff]
    %v128 = vld [vmem:[#allocation5 + $0x258] sm:$0xff]
    %v129 = vld [vmem:[#allocation5 + $0x260] sm:$0xff]
    %v130 = vld [vmem:[#allocation5 + $0x268] sm:$0xff]
    %v131 = vld [vmem:[#allocation5 + $0x270] sm:$0xff]
    %v132 = vld [vmem:[#allocation5 + $0x278] sm:$0xff]
    %v133 = vld [vmem:[#allocation7] ss:$4 sm:$0x3]
    %s134 = scalar_lea.vmem [#allocation7], 1
    %v135 = vld [vmem:[%s134] ss:$4 sm:$0x3]
    %s136 = scalar_lea.vmem [#allocation7], 2
    %v137 = vld [vmem:[%s136] ss:$4 sm:$0x3]
    %v138 = vld [vmem:[#allocation2] sm:$0xf]
    %v140 = vlaneseq
    %v141 = vshrl.u32 %v140, 7
    %v142 = vsub.s32 0, %v141
    %v143 = vrot.slane %v133, %v142
    %v144 = vlaneseq
    %v145 = vshrl.u32 %v144, 7
    %v146 = vsub.s32 1, %v145
    %v147 = vrot.slane %v133, %v146
    %v166 = vunpack.c.l.b16 %v53
    %v167 = vunpack.c.h.b16 %v53
    %v168 = vunpack.c.l.b16 %v54
    %v169 = vunpack.c.h.b16 %v54
    %v170 = vunpack.c.l.b16 %v55
    %v171 = vunpack.c.h.b16 %v55
    %v172 = vunpack.c.l.b16 %v56
    %v173 = vunpack.c.h.b16 %v56
    %v174 = vunpack.c.l.b16 %v57
    %v175 = vunpack.c.h.b16 %v57
    %v176 = vunpack.c.l.b16 %v58
    %v177 = vunpack.c.h.b16 %v58
    %v178 = vunpack.c.l.b16 %v59
    %v179 = vunpack.c.h.b16 %v59
    %v180 = vunpack.c.l.b16 %v60
    %v181 = vunpack.c.h.b16 %v60
    %v182 = vunpack.c.l.b16 %v61
    %v183 = vunpack.c.h.b16 %v61
    %v184 = vunpack.c.l.b16 %v62
    %v185 = vunpack.c.h.b16 %v62
    %v186 = vunpack.c.l.b16 %v63
    %v187 = vunpack.c.h.b16 %v63
    %v188 = vunpack.c.l.b16 %v64
    %v189 = vunpack.c.h.b16 %v64
    %v190 = vunpack.c.l.b16 %v65
    %v191 = vunpack.c.h.b16 %v65
    %v192 = vunpack.c.l.b16 %v66
    %v193 = vunpack.c.h.b16 %v66
    %v194 = vunpack.c.l.b16 %v67
    %v195 = vunpack.c.h.b16 %v67
    %v196 = vunpack.c.l.b16 %v68
    %v197 = vunpack.c.h.b16 %v68
    %v198 = vpack.c.b16 %v168, %v166
    %v199 = vpack.c.b16 %v169, %v167
    %v200 = vpack.c.b16 %v172, %v170
    %v201 = vpack.c.b16 %v173, %v171
    %v202 = vpack.c.b16 %v176, %v174
    %v203 = vpack.c.b16 %v177, %v175
    %v204 = vpack.c.b16 %v180, %v178
    %v205 = vpack.c.b16 %v181, %v179
    %v206 = vpack.c.b16 %v184, %v182
    %v207 = vpack.c.b16 %v185, %v183
    %v208 = vpack.c.b16 %v188, %v186
    %v209 = vpack.c.b16 %v189, %v187
    %v210 = vpack.c.b16 %v192, %v190
    %v211 = vpack.c.b16 %v193, %v191
    %v212 = vpack.c.b16 %v196, %v194
    %v213 = vpack.c.b16 %v197, %v195
    %230 = vmatprep.subr.bf16.mxu0 %v199
    %231 = vmatpush1.bf16.msra.mxu0 %v198
    %232 = vmatprep.subr.bf16.mxu0 %v201
    %233 = vmatpush1.bf16.msra.mxu0 %v200
    %234 = vmatprep.subr.bf16.mxu0 %v203
    %235 = vmatpush1.bf16.msra.mxu0 %v202
    %236 = vmatprep.subr.bf16.mxu0 %v205
    %237 = vmatpush1.bf16.msra.mxu0 %v204
    %238 = vmatprep.subr.bf16.mxu0 %v207
    %239 = vmatpush1.bf16.msra.mxu0 %v206
    %240 = vmatprep.subr.bf16.mxu0 %v209
    %241 = vmatpush1.bf16.msra.mxu0 %v208
    %242 = vmatprep.subr.bf16.mxu0 %v211
    %243 = vmatpush1.bf16.msra.mxu0 %v210
    %244 = vmatprep.subr.bf16.mxu0 %v213
    %245 = vmatpush1.bf16.msra.mxu0 %v212
    %246 = vmatprep.subr.bf16.mxu0 0
    %247 = vmatpush1.bf16.msra.mxu0 0
    %248 = vmatprep.subr.bf16.mxu0 0
    %249 = vmatpush1.bf16.msra.mxu0 0
    %250 = vmatprep.subr.bf16.mxu0 0
    %251 = vmatpush1.bf16.msra.mxu0 0
    %252 = vmatprep.subr.bf16.mxu0 0
    %253 = vmatpush1.bf16.msra.mxu0 0
    %254 = vmatprep.subr.bf16.mxu0 0
    %255 = vmatpush1.bf16.msra.mxu0 0
    %256 = vmatprep.subr.bf16.mxu0 0
    %257 = vmatpush1.bf16.msra.mxu0 0
    %258 = vmatprep.subr.bf16.mxu0 0
    %259 = vmatpush1.bf16.msra.mxu0 0
    %260 = vmatprep.subr.bf16.mxu0 0
    %261 = vmatpush1.bf16.msra.mxu0 0
    %262 = vmatprep.mubr.bf16.mxu0 0
    %263 = vmatmul.mubr.bf16.gmra.mrb[0].mxu0 %v138
    %v264 = vpop.f32.mrb[0].mxu0
    %v265 = vadd.f32 %v143, %v264
    %v266 = vpop.f32.mrb[0].mxu0
    %v267 = vadd.f32 %v147, %v266
    %v268 = vpop.f32.mrb[0].mxu0
    %v269 = vpop.f32.mrb[0].mxu0
    %270 = vdwg.mxu0
    %v271 = vtanh.pop %v265
    %v272 = vtanh.pop %v267
    %v273 = vpack.c.bf16 %v271, %v271
    %v274 = vpack.c.bf16 %v272, %v272
    %v276 = vlaneseq
    %v277 = vshrl.u32 %v276, 7
    %v278 = vsub.s32 0, %v277
    %v279 = vrot.slane %v135, %v278
    %v280 = vlaneseq
    %v281 = vshrl.u32 %v280, 7
    %v282 = vsub.s32 1, %v281
    %v283 = vrot.slane %v135, %v282
    %v318 = vunpack.c.l.b16 %v69
    %v319 = vunpack.c.h.b16 %v69
    %v320 = vunpack.c.l.b16 %v70
    %v321 = vunpack.c.h.b16 %v70
    %v322 = vunpack.c.l.b16 %v71
    %v323 = vunpack.c.h.b16 %v71
    %v324 = vunpack.c.l.b16 %v72
    %v325 = vunpack.c.h.b16 %v72
    %v326 = vunpack.c.l.b16 %v73
    %v327 = vunpack.c.h.b16 %v73
    %v328 = vunpack.c.l.b16 %v74
    %v329 = vunpack.c.h.b16 %v74
    %v330 = vunpack.c.l.b16 %v75
    %v331 = vunpack.c.h.b16 %v75
    %v332 = vunpack.c.l.b16 %v76
    %v333 = vunpack.c.h.b16 %v76
    %v334 = vunpack.c.l.b16 %v77
    %v335 = vunpack.c.h.b16 %v77
    %v336 = vunpack.c.l.b16 %v78
    %v337 = vunpack.c.h.b16 %v78
    %v338 = vunpack.c.l.b16 %v79
    %v339 = vunpack.c.h.b16 %v79
    %v340 = vunpack.c.l.b16 %v80
    %v341 = vunpack.c.h.b16 %v80
    %v342 = vunpack.c.l.b16 %v81
    %v343 = vunpack.c.h.b16 %v81
    %v344 = vunpack.c.l.b16 %v82
    %v345 = vunpack.c.h.b16 %v82
    %v346 = vunpack.c.l.b16 %v83
    %v347 = vunpack.c.h.b16 %v83
    %v348 = vunpack.c.l.b16 %v84
    %v349 = vunpack.c.h.b16 %v84
    %v350 = vunpack.c.l.b16 %v85
    %v351 = vunpack.c.h.b16 %v85
    %v352 = vunpack.c.l.b16 %v86
    %v353 = vunpack.c.h.b16 %v86
    %v354 = vunpack.c.l.b16 %v87
    %v355 = vunpack.c.h.b16 %v87
    %v356 = vunpack.c.l.b16 %v88
    %v357 = vunpack.c.h.b16 %v88
    %v358 = vunpack.c.l.b16 %v89
    %v359 = vunpack.c.h.b16 %v89
    %v360 = vunpack.c.l.b16 %v90
    %v361 = vunpack.c.h.b16 %v90
    %v362 = vunpack.c.l.b16 %v91
    %v363 = vunpack.c.h.b16 %v91
    %v364 = vunpack.c.l.b16 %v92
    %v365 = vunpack.c.h.b16 %v92
    %v366 = vunpack.c.l.b16 %v93
    %v367 = vunpack.c.h.b16 %v93
    %v368 = vunpack.c.l.b16 %v94
    %v369 = vunpack.c.h.b16 %v94
    %v370 = vunpack.c.l.b16 %v95
    %v371 = vunpack.c.h.b16 %v95
    %v372 = vunpack.c.l.b16 %v96
    %v373 = vunpack.c.h.b16 %v96
    %v374 = vunpack.c.l.b16 %v97
    %v375 = vunpack.c.h.b16 %v97
    %v376 = vunpack.c.l.b16 %v98
    %v377 = vunpack.c.h.b16 %v98
    %v378 = vunpack.c.l.b16 %v99
    %v379 = vunpack.c.h.b16 %v99
    %v380 = vunpack.c.l.b16 %v100
    %v381 = vunpack.c.h.b16 %v100
    %v382 = vpack.c.b16 %v320, %v318
    %v383 = vpack.c.b16 %v321, %v319
    %v384 = vpack.c.b16 %v324, %v322
    %v385 = vpack.c.b16 %v325, %v323
    %v386 = vpack.c.b16 %v328, %v326
    %v387 = vpack.c.b16 %v329, %v327
    %v388 = vpack.c.b16 %v332, %v330
    %v389 = vpack.c.b16 %v333, %v331
    %v390 = vpack.c.b16 %v336, %v334
    %v391 = vpack.c.b16 %v337, %v335
    %v392 = vpack.c.b16 %v340, %v338
    %v393 = vpack.c.b16 %v341, %v339
    %v394 = vpack.c.b16 %v344, %v342
    %v395 = vpack.c.b16 %v345, %v343
    %v396 = vpack.c.b16 %v348, %v346
    %v397 = vpack.c.b16 %v349, %v347
    %v398 = vpack.c.b16 %v352, %v350
    %v399 = vpack.c.b16 %v353, %v351
    %v400 = vpack.c.b16 %v356, %v354
    %v401 = vpack.c.b16 %v357, %v355
    %v402 = vpack.c.b16 %v360, %v358
    %v403 = vpack.c.b16 %v361, %v359
    %v404 = vpack.c.b16 %v364, %v362
    %v405 = vpack.c.b16 %v365, %v363
    %v406 = vpack.c.b16 %v368, %v366
    %v407 = vpack.c.b16 %v369, %v367
    %v408 = vpack.c.b16 %v372, %v370
    %v409 = vpack.c.b16 %v373, %v371
    %v410 = vpack.c.b16 %v376, %v374
    %v411 = vpack.c.b16 %v377, %v375
    %v412 = vpack.c.b16 %v380, %v378
    %v413 = vpack.c.b16 %v381, %v379
    %446 = vmatprep.subr.bf16.mxu0 %v383
    %447 = vmatpush1.bf16.msra.mxu0 %v382
    %448 = vmatprep.subr.bf16.mxu0 %v385
    %449 = vmatpush1.bf16.msra.mxu0 %v384
    %450 = vmatprep.subr.bf16.mxu0 %v387
    %451 = vmatpush1.bf16.msra.mxu0 %v386
    %452 = vmatprep.subr.bf16.mxu0 %v389
    %453 = vmatpush1.bf16.msra.mxu0 %v388
    %454 = vmatprep.subr.bf16.mxu0 %v391
    %455 = vmatpush1.bf16.msra.mxu0 %v390
    %456 = vmatprep.subr.bf16.mxu0 %v393
    %457 = vmatpush1.bf16.msra.mxu0 %v392
    %458 = vmatprep.subr.bf16.mxu0 %v395
    %459 = vmatpush1.bf16.msra.mxu0 %v394
    %460 = vmatprep.subr.bf16.mxu0 %v397
    %461 = vmatpush1.bf16.msra.mxu0 %v396
    %462 = vmatprep.subr.bf16.mxu0 %v399
    %463 = vmatpush1.bf16.msra.mxu0 %v398
    %464 = vmatprep.subr.bf16.mxu0 %v401
    %465 = vmatpush1.bf16.msra.mxu0 %v400
    %466 = vmatprep.subr.bf16.mxu0 %v403
    %467 = vmatpush1.bf16.msra.mxu0 %v402
    %468 = vmatprep.subr.bf16.mxu0 %v405
    %469 = vmatpush1.bf16.msra.mxu0 %v404
    %470 = vmatprep.subr.bf16.mxu0 %v407
    %471 = vmatpush1.bf16.msra.mxu0 %v406
    %472 = vmatprep.subr.bf16.mxu0 %v409
    %473 = vmatpush1.bf16.msra.mxu0 %v408
    %474 = vmatprep.subr.bf16.mxu0 %v411
    %475 = vmatpush1.bf16.msra.mxu0 %v410
    %476 = vmatprep.subr.bf16.mxu0 %v413
    %477 = vmatpush1.bf16.msra.mxu0 %v412
    %478 = vmatprep.mubr.bf16.mxu0 %v274
    %479 = vmatmul.mubr.bf16.gmra.mrb[0].mxu0 %v273
    %v480 = vpop.f32.mrb[0].mxu0
    %v481 = vadd.f32 %v279, %v480
    %v482 = vpop.f32.mrb[0].mxu0
    %v483 = vadd.f32 %v283, %v482
    %v484 = vpop.f32.mrb[0].mxu0
    %v485 = vpop.f32.mrb[0].mxu0
    %486 = vdwg.mxu0
    %v487 = vtanh.pop %v481
    %v488 = vtanh.pop %v483
    %v489 = vpack.c.bf16 %v487, %v487
    %v490 = vpack.c.bf16 %v488, %v488
    %v492 = vlaneseq
    %v493 = vshrl.u32 %v492, 7
    %v494 = vsub.s32 0, %v493
    %v495 = vrot.slane %v137, %v494
    %v496 = vlaneseq
    %v497 = vshrl.u32 %v496, 7
    %v498 = vsub.s32 1, %v497
    %v499 = vrot.slane %v137, %v498
    %v534 = vunpack.c.l.b16 %v101
    %v535 = vunpack.c.h.b16 %v101
    %v536 = vunpack.c.l.b16 %v102
    %v537 = vunpack.c.h.b16 %v102
    %v538 = vunpack.c.l.b16 %v103
    %v539 = vunpack.c.h.b16 %v103
    %v540 = vunpack.c.l.b16 %v104
    %v541 = vunpack.c.h.b16 %v104
    %v542 = vunpack.c.l.b16 %v105
    %v543 = vunpack.c.h.b16 %v105
    %v544 = vunpack.c.l.b16 %v106
    %v545 = vunpack.c.h.b16 %v106
    %v546 = vunpack.c.l.b16 %v107
    %v547 = vunpack.c.h.b16 %v107
    %v548 = vunpack.c.l.b16 %v108
    %v549 = vunpack.c.h.b16 %v108
    %v550 = vunpack.c.l.b16 %v109
    %v551 = vunpack.c.h.b16 %v109
    %v552 = vunpack.c.l.b16 %v110
    %v553 = vunpack.c.h.b16 %v110
    %v554 = vunpack.c.l.b16 %v111
    %v555 = vunpack.c.h.b16 %v111
    %v556 = vunpack.c.l.b16 %v112
    %v557 = vunpack.c.h.b16 %v112
    %v558 = vunpack.c.l.b16 %v113
    %v559 = vunpack.c.h.b16 %v113
    %v560 = vunpack.c.l.b16 %v114
    %v561 = vunpack.c.h.b16 %v114
    %v562 = vunpack.c.l.b16 %v115
    %v563 = vunpack.c.h.b16 %v115
    %v564 = vunpack.c.l.b16 %v116
    %v565 = vunpack.c.h.b16 %v116
    %v566 = vunpack.c.l.b16 %v117
    %v567 = vunpack.c.h.b16 %v117
    %v568 = vunpack.c.l.b16 %v118
    %v569 = vunpack.c.h.b16 %v118
    %v570 = vunpack.c.l.b16 %v119
    %v571 = vunpack.c.h.b16 %v119
    %v572 = vunpack.c.l.b16 %v120
    %v573 = vunpack.c.h.b16 %v120
    %v574 = vunpack.c.l.b16 %v121
    %v575 = vunpack.c.h.b16 %v121
    %v576 = vunpack.c.l.b16 %v122
    %v577 = vunpack.c.h.b16 %v122
    %v578 = vunpack.c.l.b16 %v123
    %v579 = vunpack.c.h.b16 %v123
    %v580 = vunpack.c.l.b16 %v124
    %v581 = vunpack.c.h.b16 %v124
    %v582 = vunpack.c.l.b16 %v125
    %v583 = vunpack.c.h.b16 %v125
    %v584 = vunpack.c.l.b16 %v126
    %v585 = vunpack.c.h.b16 %v126
    %v586 = vunpack.c.l.b16 %v127
    %v587 = vunpack.c.h.b16 %v127
    %v588 = vunpack.c.l.b16 %v128
    %v589 = vunpack.c.h.b16 %v128
    %v590 = vunpack.c.l.b16 %v129
    %v591 = vunpack.c.h.b16 %v129
    %v592 = vunpack.c.l.b16 %v130
    %v593 = vunpack.c.h.b16 %v130
    %v594 = vunpack.c.l.b16 %v131
    %v595 = vunpack.c.h.b16 %v131
    %v596 = vunpack.c.l.b16 %v132
    %v597 = vunpack.c.h.b16 %v132
    %v598 = vpack.c.b16 %v536, %v534
    %v599 = vpack.c.b16 %v537, %v535
    %v600 = vpack.c.b16 %v540, %v538
    %v601 = vpack.c.b16 %v541, %v539
    %v602 = vpack.c.b16 %v544, %v542
    %v603 = vpack.c.b16 %v545, %v543
    %v604 = vpack.c.b16 %v548, %v546
    %v605 = vpack.c.b16 %v549, %v547
    %v606 = vpack.c.b16 %v552, %v550
    %v607 = vpack.c.b16 %v553, %v551
    %v608 = vpack.c.b16 %v556, %v554
    %v609 = vpack.c.b16 %v557, %v555
    %v610 = vpack.c.b16 %v560, %v558
    %v611 = vpack.c.b16 %v561, %v559
    %v612 = vpack.c.b16 %v564, %v562
    %v613 = vpack.c.b16 %v565, %v563
    %v614 = vpack.c.b16 %v568, %v566
    %v615 = vpack.c.b16 %v569, %v567
    %v616 = vpack.c.b16 %v572, %v570
    %v617 = vpack.c.b16 %v573, %v571
    %v618 = vpack.c.b16 %v576, %v574
    %v619 = vpack.c.b16 %v577, %v575
    %v620 = vpack.c.b16 %v580, %v578
    %v621 = vpack.c.b16 %v581, %v579
    %v622 = vpack.c.b16 %v584, %v582
    %v623 = vpack.c.b16 %v585, %v583
    %v624 = vpack.c.b16 %v588, %v586
    %v625 = vpack.c.b16 %v589, %v587
    %v626 = vpack.c.b16 %v592, %v590
    %v627 = vpack.c.b16 %v593, %v591
    %v628 = vpack.c.b16 %v596, %v594
    %v629 = vpack.c.b16 %v597, %v595
    %662 = vmatprep.subr.bf16.mxu0 %v599
    %663 = vmatpush1.bf16.msra.mxu0 %v598
    %664 = vmatprep.subr.bf16.mxu0 %v601
    %665 = vmatpush1.bf16.msra.mxu0 %v600
    %666 = vmatprep.subr.bf16.mxu0 %v603
    %667 = vmatpush1.bf16.msra.mxu0 %v602
    %668 = vmatprep.subr.bf16.mxu0 %v605
    %669 = vmatpush1.bf16.msra.mxu0 %v604
    %670 = vmatprep.subr.bf16.mxu0 %v607
    %671 = vmatpush1.bf16.msra.mxu0 %v606
    %672 = vmatprep.subr.bf16.mxu0 %v609
    %673 = vmatpush1.bf16.msra.mxu0 %v608
    %674 = vmatprep.subr.bf16.mxu0 %v611
    %675 = vmatpush1.bf16.msra.mxu0 %v610
    %676 = vmatprep.subr.bf16.mxu0 %v613
    %677 = vmatpush1.bf16.msra.mxu0 %v612
    %678 = vmatprep.subr.bf16.mxu0 %v615
    %679 = vmatpush1.bf16.msra.mxu0 %v614
    %680 = vmatprep.subr.bf16.mxu0 %v617
    %681 = vmatpush1.bf16.msra.mxu0 %v616
    %682 = vmatprep.subr.bf16.mxu0 %v619
    %683 = vmatpush1.bf16.msra.mxu0 %v618
    %684 = vmatprep.subr.bf16.mxu0 %v621
    %685 = vmatpush1.bf16.msra.mxu0 %v620
    %686 = vmatprep.subr.bf16.mxu0 %v623
    %687 = vmatpush1.bf16.msra.mxu0 %v622
    %688 = vmatprep.subr.bf16.mxu0 %v625
    %689 = vmatpush1.bf16.msra.mxu0 %v624
    %690 = vmatprep.subr.bf16.mxu0 %v627
    %691 = vmatpush1.bf16.msra.mxu0 %v626
    %692 = vmatprep.subr.bf16.mxu0 %v629
    %693 = vmatpush1.bf16.msra.mxu0 %v628
    %694 = vmatprep.mubr.bf16.mxu0 %v490
    %695 = vmatmul.mubr.bf16.gmra.mrb[0].mxu0 %v489
    %v696 = vpop.f32.mrb[0].mxu0
    %v697 = vadd.f32 %v495, %v696
    %v698 = vpop.f32.mrb[0].mxu0
    %v699 = vadd.f32 %v499, %v698
    %v700 = vpop.f32.mrb[0].mxu0
    %v701 = vpop.f32.mrb[0].mxu0
    %702 = vdwg.mxu0
    %703 = vst [vmem:[#allocation8] sm:$0xff] %v697
    %704 = vst [vmem:[#allocation8 + $0x8] sm:$0xff] %v699
    // Predicated region
    $region26: #{tpu_custom_call.1} parent=1 // pred_check
      _
    $region27: #{tpu_custom_call.1} parent=1 // pred_check_branch
      %706 = sbr.rel (0) target = $region29
    $region28: #{tpu_custom_call.1} parent=1 // pred_region
      %s708 = ssub.s32 256, 256
      %709 = vsyncadd [#allocation4], %s708
      %s711 = sshll.u32 [#allocation8], 4
      %s712 = int_to_ptr.vmem [resolvable:$true] %s711
      %714 = dma.vmem_to_hbm [thread:$0]  %s712, 256, %s3, [#allocation4]
    $region29: #{tpu_custom_call.1} parent=1 // pred_fallthru
      _
    // Predicated region
    $region30: #{tpu_custom_call.1} parent=1 // pred_check
      _
    $region31: #{tpu_custom_call.1} parent=1 // pred_check_branch
      %716 = sbr.rel (0) target = $region33
    $region32: #{tpu_custom_call.1} parent=1 // pred_region
      %717 = dma.done [#allocation4], 256
    $region33: #{tpu_custom_call.1} parent=1 // pred_fallthru
      _
    %718 = vsyncpa [#allocation3], 1
    %719 = vsyncpa [#allocation6], 1
    %720 = vsyncpa [#allocation4], 1

</llo_original>
